<compile_context>
chip_gen: v5e
topology: v5e:2x2
jax: 0.10.0
libtpu: 0.0.40
codegen_flags: <defaults>
</compile_context>

<pallas_src>
import functools

import jax
import jax.numpy as jnp
from jax.experimental import pallas as pl
from jax.experimental.pallas import tpu as pltpu


def _psoftplus_kernel(abw_ref, x_ref, o_ref):
    # abw_ref: (3,) f32 in SMEM -> [a, b, w]
    a = abw_ref[0]
    b = abw_ref[1]
    w = abw_ref[2]
    x = x_ref[...].astype(jnp.float32)
    z = w * x + b
    y = a * jnp.log1p(jnp.exp(z))          # == a * log(1 + exp(w*x + b))
    o_ref[...] = y.astype(o_ref.dtype)


@functools.partial(jax.jit, static_argnames=())
def parametrized_softplus(x, a, b, w):
    """Apply a * log(1 + exp(w*x + b)) elementwise to x (any shape)."""
    orig_shape = x.shape
    orig_dtype = x.dtype

    # Keep f32 / bf16 in their native dtype for HBM traffic; anything else
    # is computed in f32.
    if orig_dtype not in (jnp.dtype(jnp.float32), jnp.dtype(jnp.bfloat16)):
        x = x.astype(jnp.float32)
    io_dtype = x.dtype
    itemsize = jnp.dtype(io_dtype).itemsize

    LANES = 128
    # Minimum sublane granularity: 8 rows for 32-bit, 16 rows for 16-bit.
    min_sub = 8 * (4 // itemsize)
    tile_elems = LANES * min_sub

    flat = x.reshape(-1)
    n = flat.shape[0]

    # Pad only up to one minimal (min_sub, 128) tile (<= 2048 elems), not to
    # a multiple of the big block — the last grid step is a partial block.
    n_pad = pl.cdiv(n, tile_elems) * tile_elems
    if n_pad != n:
        flat = jnp.pad(flat, (0, n_pad - n))
    rows = n_pad // LANES
    x2d = flat.reshape(rows, LANES)

    # ~2 MiB blocks: (4096, 128) f32 or (8192, 128) bf16. Double-buffered
    # in+out stays well under the scoped-VMEM default on every generation.
    tm_max = max(min_sub, (2 * 1024 * 1024) // (LANES * itemsize))
    tm = min(rows, tm_max)
    grid = (pl.cdiv(rows, tm),)

    abw = jnp.stack([
        jnp.asarray(a, dtype=jnp.float32),
        jnp.asarray(b, dtype=jnp.float32),
        jnp.asarray(w, dtype=jnp.float32),
    ])

    out2d = pl.pallas_call(
        _psoftplus_kernel,
        out_shape=jax.ShapeDtypeStruct((rows, LANES), io_dtype),
        grid_spec=pltpu.PrefetchScalarGridSpec(
            num_scalar_prefetch=0,
            grid=grid,
            in_specs=[
                pl.BlockSpec(memory_space=pltpu.SMEM),          # (3,) scalars
                pl.BlockSpec((tm, LANES), lambda i: (i, 0)),    # x tile
            ],
            out_specs=pl.BlockSpec((tm, LANES), lambda i: (i, 0)),
        ),
        compiler_params=pltpu.CompilerParams(
            dimension_semantics=("parallel",),
        ),
    )(abw, x2d)

    out = out2d.reshape(-1)
    if n_pad != n:
        out = out[:n]
    return out.reshape(orig_shape).astype(orig_dtype)


def reference_parametrized_softplus(x, a, b, w):
    return a * jnp.log1p(jnp.exp(w * x + b))


if __name__ == "__main__":
    key = jax.random.PRNGKey(0)

    # Small NCHW input, consistent with the module's elementwise use.
    x = jax.random.normal(key, (2, 4, 16, 16), dtype=jnp.float32) * 10.0

    # Non-trivial (learnable) parameter values so a/b/w are actually exercised.
    a = jnp.float32(0.75)
    b = jnp.float32(0.25)
    w = jnp.float32(1.5)

    out = parametrized_softplus(x, a, b, w)
    out = jax.block_until_ready(out)

    ref = reference_parametrized_softplus(x, a, b, w)
    assert out.shape == x.shape and out.dtype == x.dtype
    assert jnp.allclose(out, ref, atol=1e-5, rtol=1e-5), "mismatch vs reference"

    print("KERNEL_OK")
</pallas_src>

<mosaic_0001>
module attributes {stable_mosaic.version = 11 : i64} {
  func.func @_psoftplus_kernel(%arg0: i32, %arg1: memref<3xf32, #tpu.memory_space<smem>>, %arg2: memref<16x128xf32, #tpu.memory_space<vmem>>, %arg3: memref<16x128xf32, #tpu.memory_space<vmem>>) attributes {dimension_semantics = [#tpu.dimension_semantics<parallel>], iteration_bounds = array<i64: 1>, scalar_prefetch = 0 : i64, scratch_operands = 0 : i64, tpu.core_type = #tpu.core_type<tc>, window_params = [{transform_indices = @transform_0, window_bounds = array<i64: 3>}, {transform_indices = @transform_1, window_bounds = array<i64: 16, 128>}, {transform_indices = @transform_2, window_bounds = array<i64: 16, 128>}]} {
    %c0 = arith.constant 0 : index
    %0 = memref.load %arg1[%c0] : memref<3xf32, #tpu.memory_space<smem>>
    %c1 = arith.constant 1 : index
    %1 = memref.load %arg1[%c1] : memref<3xf32, #tpu.memory_space<smem>>
    %c2 = arith.constant 2 : index
    %2 = memref.load %arg1[%c2] : memref<3xf32, #tpu.memory_space<smem>>
    %c0_0 = arith.constant 0 : index
    %c0_1 = arith.constant 0 : index
    %3 = vector.load %arg2[%c0_0, %c0_1] : memref<16x128xf32, #tpu.memory_space<vmem>>, vector<16x128xf32>
    %4 = vector.broadcast %2 : f32 to vector<16x128xf32>
    %5 = arith.mulf %4, %3 : vector<16x128xf32>
    %6 = vector.broadcast %1 : f32 to vector<16x128xf32>
    %7 = arith.addf %5, %6 : vector<16x128xf32>
    %8 = math.exp %7 : vector<16x128xf32>
    %9 = math.log1p %8 : vector<16x128xf32>
    %10 = vector.broadcast %0 : f32 to vector<16x128xf32>
    %11 = arith.mulf %10, %9 : vector<16x128xf32>
    %c0_2 = arith.constant 0 : index
    %c0_3 = arith.constant 0 : index
    %12 = vector.load %arg3[%c0_2, %c0_3] : memref<16x128xf32, #tpu.memory_space<vmem>>, vector<16x128xf32>
    tpu.vector_store %arg3[%c0_2, %c0_3], %11 {strides = array<i32>} : memref<16x128xf32, #tpu.memory_space<vmem>>, vector<16x128xf32>,
    return
  }
  func.func @transform_0(%arg0: i32) -> i32 {
    %c0_i32 = arith.constant 0 : i32
    %c0_i32_0 = arith.constant 0 : i32
    return %c0_i32 : i32
  }
  func.func @transform_1(%arg0: i32) -> (i32, i32) {
    %c0_i32 = arith.constant 0 : i32
    %c0_i32_0 = arith.constant 0 : i32
    return %arg0, %c0_i32 : i32, i32
  }
  func.func @transform_2(%arg0: i32) -> (i32, i32) {
    %c0_i32 = arith.constant 0 : i32
    %c0_i32_0 = arith.constant 0 : i32
    return %arg0, %c0_i32 : i32, i32
  }
}

</mosaic_0001>

<llo_original>
// kernel: parametrized_softplus.1
$region0: #{parametrized_softplus.1}
  #allocation0 [shape = 'u32[]', space=smem, size = 0x4, offset = 0x4, fixed_abs, tag = 'smem constant byte address 0x4 - core index']
  #allocation1 [shape = 'u32[72,128]{1,0:T(1,128)}', space=vmem, size = 0x9000, scoped, tag = 'internal scratch']
  %s0 = inlined_call_operand.vmem [shape: f32[3], index: 0, kind: input, shape index: {}]
  %s1 = inlined_call_operand.vmem [shape: f32[16,128], index: 1, kind: input, shape index: {}]
  %s2 = inlined_call_operand.vmem [shape: f32[16,128], index: 2, kind: output, shape index: {}]
  %s3 = sld [smem:[#allocation0]]
  $region22: #{parametrized_softplus.1} parent=0
    _
  %s5 = ssub.s32 1, %s3
  %s6 = scalar_select 0, %s5, %s3
  $region1: #{parametrized_softplus.1} parent=0
    #allocation2 [shape = 'u8[512]{0}', space=smem, size = 0x200, scoped, tag = 'input window, operand 0, single buffered']
    #allocation3 [shape = 's32[1]{0}', space=sflag, size = 0x4, scoped, tag = 'scoped memory for parametrized_softplus.1']
    %7 = vsyncpa [#allocation3], 0
    // Predicated region
    $region2: #{parametrized_softplus.1} parent=1 // pred_check
      _
    $region3: #{parametrized_softplus.1} parent=1 // pred_check_branch
      %9 = sbr.rel (0) target = $region5
    $region4: #{parametrized_softplus.1} parent=1 // pred_region
      %11 = vsyncadd [#allocation3], 0
      %s13 = sshll.u32 %s0, 4
      %s14 = int_to_ptr.vmem [resolvable:$true] %s13
      %16 = dma.vmem_to_smem %s14, 16, [#allocation2], [#allocation3]
    $region5: #{parametrized_softplus.1} parent=1 // pred_fallthru
      _
    // Predicated region
    $region6: #{parametrized_softplus.1} parent=1 // pred_check
      _
    $region7: #{parametrized_softplus.1} parent=1 // pred_check_branch
      %18 = sbr.rel (0) target = $region9
    $region8: #{parametrized_softplus.1} parent=1 // pred_region
      _
    $region9: #{parametrized_softplus.1} parent=1 // pred_fallthru
      _
    // Predicated region
    $region10: #{parametrized_softplus.1} parent=1 // pred_check
      _
    $region11: #{parametrized_softplus.1} parent=1 // pred_check_branch
      %20 = sbr.rel (0) target = $region13
    $region12: #{parametrized_softplus.1} parent=1 // pred_region
      %22 = dma.done [#allocation3], 16
    $region13: #{parametrized_softplus.1} parent=1 // pred_fallthru
      _
    %23 = sfence
    %s24 = sld [smem:[#allocation2]]
    %s25 = sld [smem:[#allocation2 + $0x1]]
    %s26 = sld [smem:[#allocation2 + $0x2]]
    %v27 = vld [vmem:[%s1] sm:$0xff]
    %v28 = vld [vmem:[%s1 + $0x8] sm:$0xff]
    %v29 = vstv %s26
    %v30 = vmul.f32 %v29, %v27
    %v31 = vmul.f32 %v29, %v28
    %v32 = vstv %s25
    %v33 = vadd.f32 %v30, %v32
    %v34 = vadd.f32 %v31, %v32
    %v35 = vmul.f32 %v33, 1.442695
    %v36 = vpow.pop %v35
    %v37 = vmul.f32 %v34, 1.442695
    %v38 = vpow.pop %v37
    %v39 = vadd.f32 %v36, 1.0
    %v40 = vlog2.pop %v39
    %v41 = vmul.f32 %v40, 0.6931472
    %v42 = vmul.f32 -0.5, %v36
    %v43 = vadd.f32 %v42, 1.0
    %v44 = vmul.f32 %v43, %v36
    %v45 = vand.u32 2147483647, %v36
    %vm46 = vcmp.lt.f32.partialorder %v45, 0.0004427343
    %v47 = vsel %vm46, %v44, %v41
    %v48 = vadd.f32 %v38, 1.0
    %v49 = vlog2.pop %v48
    %v50 = vmul.f32 %v49, 0.6931472
    %v51 = vmul.f32 -0.5, %v38
    %v52 = vadd.f32 %v51, 1.0
    %v53 = vmul.f32 %v52, %v38
    %v54 = vand.u32 2147483647, %v38
    %vm55 = vcmp.lt.f32.partialorder %v54, 0.0004427343
    %v56 = vsel %vm55, %v53, %v50
    %v57 = vstv %s24
    %v58 = vmul.f32 %v57, %v47
    %v59 = vmul.f32 %v57, %v56
    %60 = vst [vmem:[%s2] sm:$0xff] %v58
    %61 = vst [vmem:[%s2 + $0x8] sm:$0xff] %v59
    // Predicated region
    $region14: #{parametrized_softplus.1} parent=1 // pred_check
      _
    $region15: #{parametrized_softplus.1} parent=1 // pred_check_branch
      %63 = sbr.rel (0) target = $region17
    $region16: #{parametrized_softplus.1} parent=1 // pred_region
      _
    $region17: #{parametrized_softplus.1} parent=1 // pred_fallthru
      _
    // Predicated region
    $region18: #{parametrized_softplus.1} parent=1 // pred_check
      _
    $region19: #{parametrized_softplus.1} parent=1 // pred_check_branch
      %65 = sbr.rel (0) target = $region21
    $region20: #{parametrized_softplus.1} parent=1 // pred_region
      _
    $region21: #{parametrized_softplus.1} parent=1 // pred_fallthru
      _
    %66 = vsyncpa [#allocation3], 1

</llo_original>
